<compile_context>
chip_gen: v5e
topology: v5e:2x2
jax: 0.10.0
libtpu: 0.0.40
codegen_flags: <defaults>
</compile_context>

<pallas_src>
import jax
import jax.numpy as jnp
from jax.experimental import pallas as pl
from jax.experimental.pallas import tpu as pltpu


def mlp_kernel(x_ref, w1_ref, b1_ref, w2_ref, b2_ref, w3_ref, b3_ref,
               w4_ref, b4_ref, o_ref):
    # fc1 + tanh    (matmul in compute dtype, f32 accumulate, f32 epilogue)
    h = jnp.dot(x_ref[...], w1_ref[...],
                preferred_element_type=jnp.float32) + b1_ref[...]
    h = jnp.tanh(h)
    # fc2 + relu
    h = jnp.dot(h.astype(w2_ref.dtype), w2_ref[...],
                preferred_element_type=jnp.float32) + b2_ref[...]
    h = jnp.maximum(h, 0.0)
    # fc3 + relu
    h = jnp.dot(h.astype(w3_ref.dtype), w3_ref[...],
                preferred_element_type=jnp.float32) + b3_ref[...]
    h = jnp.maximum(h, 0.0)
    # fc4 (no activation), lane-dense padded output (TB, 128)
    o_ref[...] = (jnp.dot(h.astype(w4_ref.dtype), w4_ref[...],
                          preferred_element_type=jnp.float32) + b4_ref[...]
                  ).astype(o_ref.dtype)


def mlp_forward(x, params, *, compute_dtype=jnp.bfloat16, tb=256, out_pad=128):
    """x: (B, input_dim) f32; params: (in,out) weights + (1,out) biases (f32).

    Returns (B, 1) f32, matching the PyTorch module's forward.
    """
    B, in_dim = x.shape
    h1 = params["w1"].shape[1]
    h2 = params["w2"].shape[1]
    h3 = params["w3"].shape[1]

    # MXU operands in compute dtype (bf16 by default); biases stay f32 for the
    # VPU epilogue (v5e has no bf16 VPU/EUP path).
    xq = x.astype(compute_dtype)
    w1 = params["w1"].astype(compute_dtype)
    w2 = params["w2"].astype(compute_dtype)
    w3 = params["w3"].astype(compute_dtype)
    # Lane-dense final layer: zero-pad N=1 -> out_pad (128) columns.
    w4 = jnp.pad(params["w4"], ((0, 0), (0, out_pad - 1))).astype(compute_dtype)
    b1 = params["b1"].astype(jnp.float32)
    b2 = params["b2"].astype(jnp.float32)
    b3 = params["b3"].astype(jnp.float32)
    b4 = jnp.pad(params["b4"], ((0, 0), (0, out_pad - 1))).astype(jnp.float32)

    # Batch tile: large enough to feed the MXU, shrunk (to a multiple of 8)
    # for tiny batches. Pad the batch to a multiple of the tile.
    tb = int(min(tb, max(8, -(-B // 8) * 8)))
    n_tiles = -(-B // tb)                      # cdiv
    Bp = n_tiles * tb
    if Bp != B:
        xq = jnp.pad(xq, ((0, Bp - B), (0, 0)))

    row = lambda i: (i, 0)                     # x / out: new tile per grid step
    const = lambda i: (0, 0)                   # weights/biases: resident

    # Weights total ~12 KB and activation tiles are tiny at TB=256, so the
    # default scoped VMEM limit is plenty (no vmem_limit_bytes needed).
    out = pl.pallas_call(
        mlp_kernel,
        out_shape=jax.ShapeDtypeStruct((Bp, out_pad), jnp.float32),
        grid=(n_tiles,),
        in_specs=[
            pl.BlockSpec((tb, in_dim), row),
            pl.BlockSpec((in_dim, h1), const), pl.BlockSpec((1, h1), const),
            pl.BlockSpec((h1, h2), const),     pl.BlockSpec((1, h2), const),
            pl.BlockSpec((h2, h3), const),     pl.BlockSpec((1, h3), const),
            pl.BlockSpec((h3, out_pad), const), pl.BlockSpec((1, out_pad), const),
        ],
        out_specs=pl.BlockSpec((tb, out_pad), row),
        compiler_params=pltpu.CompilerParams(
            dimension_semantics=("parallel",)),
    )(xq, w1, b1, w2, b2, w3, b3, w4, b4)

    # Free layout plumbing: drop padded rows and the 127 zero columns.
    return out[:B, :1]


def init_params(key, input_dim, h1, h2, h3):
    """Deterministic init mimicking PyTorch nn.Linear (U(-1/sqrt(in), 1/sqrt(in)))."""
    def linear(k, fan_in, fan_out):
        kw, kb = jax.random.split(k)
        bound = 1.0 / jnp.sqrt(jnp.float32(fan_in))
        w = jax.random.uniform(kw, (fan_in, fan_out), jnp.float32, -bound, bound)
        b = jax.random.uniform(kb, (1, fan_out), jnp.float32, -bound, bound)
        return w, b

    k1, k2, k3, k4 = jax.random.split(key, 4)
    w1, b1 = linear(k1, input_dim, h1)
    w2, b2 = linear(k2, h1, h2)
    w3, b3 = linear(k3, h2, h3)
    w4, b4 = linear(k4, h3, 1)
    return {"w1": w1, "b1": b1, "w2": w2, "b2": b2,
            "w3": w3, "b3": b3, "w4": w4, "b4": b4}


def reference_forward(x, p, compute_dtype=jnp.float32):
    """Pure-JAX reference with the same dtype policy as the kernel."""
    def layer(a, w, b):
        return jnp.dot(a.astype(compute_dtype), w.astype(compute_dtype),
                       preferred_element_type=jnp.float32) + b
    h = jnp.tanh(layer(x, p["w1"], p["b1"]))
    h = jnp.maximum(layer(h, p["w2"], p["b2"]), 0.0)
    h = jnp.maximum(layer(h, p["w3"], p["b3"]), 0.0)
    return layer(h, p["w4"], p["b4"])


if __name__ == "__main__":
    input_dim, h1, h2, h3 = 32, 64, 64, 32

    key = jax.random.PRNGKey(0)
    kx, kx2, kp = jax.random.split(key, 3)
    params = init_params(kp, input_dim, h1, h2, h3)

    # Small batch (single grid step), exact f32 path vs f32 reference.
    x_small = jax.random.normal(kx, (8, input_dim), jnp.float32)
    out_f32 = jax.block_until_ready(
        mlp_forward(x_small, params, compute_dtype=jnp.float32))
    ref_f32 = reference_forward(x_small, params, jnp.float32)
    assert out_f32.shape == (8, 1), out_f32.shape
    assert jnp.allclose(out_f32, ref_f32, atol=1e-5, rtol=1e-5), \
        "f32 path mismatch vs reference"

    # Larger (non-multiple-of-tile) batch: multi-step grid + padding + bf16
    # MXU path, checked against a reference using the same bf16 casts.
    x_big = jax.random.normal(kx2, (300, input_dim), jnp.float32)
    out_bf16 = jax.block_until_ready(
        mlp_forward(x_big, params, compute_dtype=jnp.bfloat16))
    ref_bf16 = reference_forward(x_big, params, jnp.bfloat16)
    assert out_bf16.shape == (300, 1), out_bf16.shape
    assert jnp.allclose(out_bf16, ref_bf16, atol=2e-3, rtol=2e-3), \
        "bf16 path mismatch vs reference"

    print("KERNEL_OK")
</pallas_src>

<mosaic_0001>
module attributes {stable_mosaic.version = 11 : i64} {
  func.func @mlp_kernel(%arg0: i32, %arg1: memref<8x32xf32, #tpu.memory_space<vmem>>, %arg2: memref<32x64xf32, #tpu.memory_space<vmem>>, %arg3: memref<1x64xf32, #tpu.memory_space<vmem>>, %arg4: memref<64x64xf32, #tpu.memory_space<vmem>>, %arg5: memref<1x64xf32, #tpu.memory_space<vmem>>, %arg6: memref<64x32xf32, #tpu.memory_space<vmem>>, %arg7: memref<1x32xf32, #tpu.memory_space<vmem>>, %arg8: memref<32x128xf32, #tpu.memory_space<vmem>>, %arg9: memref<1x128xf32, #tpu.memory_space<vmem>>, %arg10: memref<8x128xf32, #tpu.memory_space<vmem>>) attributes {dimension_semantics = [#tpu.dimension_semantics<parallel>], iteration_bounds = array<i64: 1>, scalar_prefetch = 0 : i64, scratch_operands = 0 : i64, tpu.core_type = #tpu.core_type<tc>, window_params = [{transform_indices = @transform_0, window_bounds = array<i64: 8, 32>}, {pipeline_mode = #tpu.pipeline_mode<synchronous>, transform_indices = @transform_1, window_bounds = array<i64: 32, 64>}, {pipeline_mode = #tpu.pipeline_mode<synchronous>, transform_indices = @transform_2, window_bounds = array<i64: 1, 64>}, {pipeline_mode = #tpu.pipeline_mode<synchronous>, transform_indices = @transform_3, window_bounds = array<i64: 64, 64>}, {pipeline_mode = #tpu.pipeline_mode<synchronous>, transform_indices = @transform_4, window_bounds = array<i64: 1, 64>}, {pipeline_mode = #tpu.pipeline_mode<synchronous>, transform_indices = @transform_5, window_bounds = array<i64: 64, 32>}, {pipeline_mode = #tpu.pipeline_mode<synchronous>, transform_indices = @transform_6, window_bounds = array<i64: 1, 32>}, {pipeline_mode = #tpu.pipeline_mode<synchronous>, transform_indices = @transform_7, window_bounds = array<i64: 32, 128>}, {pipeline_mode = #tpu.pipeline_mode<synchronous>, transform_indices = @transform_8, window_bounds = array<i64: 1, 128>}, {transform_indices = @transform_9, window_bounds = array<i64: 8, 128>}]} {
    %c0 = arith.constant 0 : index
    %c0_0 = arith.constant 0 : index
    %0 = vector.load %arg1[%c0, %c0_0] : memref<8x32xf32, #tpu.memory_space<vmem>>, vector<8x32xf32>
    %c0_1 = arith.constant 0 : index
    %c0_2 = arith.constant 0 : index
    %1 = vector.load %arg2[%c0_1, %c0_2] : memref<32x64xf32, #tpu.memory_space<vmem>>, vector<32x64xf32>
    %cst = arith.constant dense<0.000000e+00> : vector<8x64xf32>
    %2 = tpu.matmul %0, %1, %cst {dimension_numbers = #tpu.dot_dimension_numbers<[1], [0], [0], [1], [0, 0, 1, 1], [], []>} : vector<8x32xf32>, vector<32x64xf32>, vector<8x64xf32> -> vector<8x64xf32>
    %c0_3 = arith.constant 0 : index
    %c0_4 = arith.constant 0 : index
    %3 = vector.load %arg3[%c0_3, %c0_4] : memref<1x64xf32, #tpu.memory_space<vmem>>, vector<1x64xf32>
    %4 = vector.broadcast %3 : vector<1x64xf32> to vector<8x64xf32>
    %5 = arith.addf %2, %4 : vector<8x64xf32>
    %6 = math.tanh %5 : vector<8x64xf32>
    %c0_5 = arith.constant 0 : index
    %c0_6 = arith.constant 0 : index
    %7 = vector.load %arg4[%c0_5, %c0_6] : memref<64x64xf32, #tpu.memory_space<vmem>>, vector<64x64xf32>
    %cst_7 = arith.constant dense<0.000000e+00> : vector<8x64xf32>
    %8 = tpu.matmul %6, %7, %cst_7 {dimension_numbers = #tpu.dot_dimension_numbers<[1], [0], [0], [1], [0, 0, 1, 1], [], []>} : vector<8x64xf32>, vector<64x64xf32>, vector<8x64xf32> -> vector<8x64xf32>
    %c0_8 = arith.constant 0 : index
    %c0_9 = arith.constant 0 : index
    %9 = vector.load %arg5[%c0_8, %c0_9] : memref<1x64xf32, #tpu.memory_space<vmem>>, vector<1x64xf32>
    %10 = vector.broadcast %9 : vector<1x64xf32> to vector<8x64xf32>
    %11 = arith.addf %8, %10 : vector<8x64xf32>
    %cst_10 = arith.constant 0.000000e+00 : f32
    %12 = vector.broadcast %cst_10 : f32 to vector<8x64xf32>
    %13 = arith.maximumf %11, %12 : vector<8x64xf32>
    %c0_11 = arith.constant 0 : index
    %c0_12 = arith.constant 0 : index
    %14 = vector.load %arg6[%c0_11, %c0_12] : memref<64x32xf32, #tpu.memory_space<vmem>>, vector<64x32xf32>
    %cst_13 = arith.constant dense<0.000000e+00> : vector<8x32xf32>
    %15 = tpu.matmul %13, %14, %cst_13 {dimension_numbers = #tpu.dot_dimension_numbers<[1], [0], [0], [1], [0, 0, 1, 1], [], []>} : vector<8x64xf32>, vector<64x32xf32>, vector<8x32xf32> -> vector<8x32xf32>
    %c0_14 = arith.constant 0 : index
    %c0_15 = arith.constant 0 : index
    %16 = vector.load %arg7[%c0_14, %c0_15] : memref<1x32xf32, #tpu.memory_space<vmem>>, vector<1x32xf32>
    %17 = vector.broadcast %16 : vector<1x32xf32> to vector<8x32xf32>
    %18 = arith.addf %15, %17 : vector<8x32xf32>
    %cst_16 = arith.constant 0.000000e+00 : f32
    %19 = vector.broadcast %cst_16 : f32 to vector<8x32xf32>
    %20 = arith.maximumf %18, %19 : vector<8x32xf32>
    %c0_17 = arith.constant 0 : index
    %c0_18 = arith.constant 0 : index
    %21 = vector.load %arg8[%c0_17, %c0_18] : memref<32x128xf32, #tpu.memory_space<vmem>>, vector<32x128xf32>
    %cst_19 = arith.constant dense<0.000000e+00> : vector<8x128xf32>
    %22 = tpu.matmul %20, %21, %cst_19 {dimension_numbers = #tpu.dot_dimension_numbers<[1], [0], [0], [1], [0, 0, 1, 1], [], []>} : vector<8x32xf32>, vector<32x128xf32>, vector<8x128xf32> -> vector<8x128xf32>
    %c0_20 = arith.constant 0 : index
    %c0_21 = arith.constant 0 : index
    %23 = vector.load %arg9[%c0_20, %c0_21] : memref<1x128xf32, #tpu.memory_space<vmem>>, vector<1x128xf32>
    %24 = vector.broadcast %23 : vector<1x128xf32> to vector<8x128xf32>
    %25 = arith.addf %22, %24 : vector<8x128xf32>
    %c0_22 = arith.constant 0 : index
    %c0_23 = arith.constant 0 : index
    %26 = vector.load %arg10[%c0_22, %c0_23] : memref<8x128xf32, #tpu.memory_space<vmem>>, vector<8x128xf32>
    tpu.vector_store %arg10[%c0_22, %c0_23], %25 {strides = array<i32>} : memref<8x128xf32, #tpu.memory_space<vmem>>, vector<8x128xf32>,
    return
  }
  func.func @transform_0(%arg0: i32) -> (i32, i32) {
    %c0_i32 = arith.constant 0 : i32
    %c0_i32_0 = arith.constant 0 : i32
    return %arg0, %c0_i32 : i32, i32
  }
  func.func @transform_1(%arg0: i32) -> (i32, i32) {
    %c0_i32 = arith.constant 0 : i32
    %c0_i32_0 = arith.constant 0 : i32
    %c0_i32_1 = arith.constant 0 : i32
    return %c0_i32, %c0_i32_0 : i32, i32
  }
  func.func @transform_2(%arg0: i32) -> (i32, i32) {
    %c0_i32 = arith.constant 0 : i32
    %c0_i32_0 = arith.constant 0 : i32
    %c0_i32_1 = arith.constant 0 : i32
    return %c0_i32, %c0_i32_0 : i32, i32
  }
  func.func @transform_3(%arg0: i32) -> (i32, i32) {
    %c0_i32 = arith.constant 0 : i32
    %c0_i32_0 = arith.constant 0 : i32
    %c0_i32_1 = arith.constant 0 : i32
    return %c0_i32, %c0_i32_0 : i32, i32
  }
  func.func @transform_4(%arg0: i32) -> (i32, i32) {
    %c0_i32 = arith.constant 0 : i32
    %c0_i32_0 = arith.constant 0 : i32
    %c0_i32_1 = arith.constant 0 : i32
    return %c0_i32, %c0_i32_0 : i32, i32
  }
  func.func @transform_5(%arg0: i32) -> (i32, i32) {
    %c0_i32 = arith.constant 0 : i32
    %c0_i32_0 = arith.constant 0 : i32
    %c0_i32_1 = arith.constant 0 : i32
    return %c0_i32, %c0_i32_0 : i32, i32
  }
  func.func @transform_6(%arg0: i32) -> (i32, i32) {
    %c0_i32 = arith.constant 0 : i32
    %c0_i32_0 = arith.constant 0 : i32
    %c0_i32_1 = arith.constant 0 : i32
    return %c0_i32, %c0_i32_0 : i32, i32
  }
  func.func @transform_7(%arg0: i32) -> (i32, i32) {
    %c0_i32 = arith.constant 0 : i32
    %c0_i32_0 = arith.constant 0 : i32
    %c0_i32_1 = arith.constant 0 : i32
    return %c0_i32, %c0_i32_0 : i32, i32
  }
  func.func @transform_8(%arg0: i32) -> (i32, i32) {
    %c0_i32 = arith.constant 0 : i32
    %c0_i32_0 = arith.constant 0 : i32
    %c0_i32_1 = arith.constant 0 : i32
    return %c0_i32, %c0_i32_0 : i32, i32
  }
  func.func @transform_9(%arg0: i32) -> (i32, i32) {
    %c0_i32 = arith.constant 0 : i32
    %c0_i32_0 = arith.constant 0 : i32
    return %arg0, %c0_i32 : i32, i32
  }
}

</mosaic_0001>

<llo_original>
// kernel: tpu_custom_call.1
$region0: #{tpu_custom_call.1}
  #allocation0 [shape = 'u32[]', space=smem, size = 0x4, offset = 0x4, fixed_abs, tag = 'smem constant byte address 0x4 - core index']
  #allocation1 [shape = 'u32[72,128]{1,0:T(1,128)}', space=vmem, size = 0x9000, scoped, tag = 'internal scratch']
  %s0 = inlined_call_operand.hbm [shape: f32[8,32], index: 0, kind: input, shape index: {}]
  %s1 = inlined_call_operand.vmem [shape: f32[32,64], index: 1, kind: input, shape index: {}]
  %s2 = inlined_call_operand.vmem [shape: f32[1,64], index: 2, kind: input, shape index: {}]
  %s3 = inlined_call_operand.vmem [shape: f32[64,64], index: 3, kind: input, shape index: {}]
  %s4 = inlined_call_operand.vmem [shape: f32[1,64], index: 4, kind: input, shape index: {}]
  %s5 = inlined_call_operand.vmem [shape: f32[64,32], index: 5, kind: input, shape index: {}]
  %s6 = inlined_call_operand.vmem [shape: f32[1,32], index: 6, kind: input, shape index: {}]
  %s7 = inlined_call_operand.hbm [shape: f32[32,128], index: 7, kind: input, shape index: {}]
  %s8 = inlined_call_operand.vmem [shape: f32[1,128], index: 8, kind: input, shape index: {}]
  %s9 = inlined_call_operand.hbm [shape: f32[8,128], index: 9, kind: output, shape index: {}]
  %s10 = sld [smem:[#allocation0]]
  $region54: #{tpu_custom_call.1} parent=0
    _
  %s12 = ssub.s32 1, %s10
  %s13 = scalar_select 0, %s12, %s10
  $region1: #{tpu_custom_call.1} parent=0
    #allocation2 [shape = 'u8[4096]{0}', space=vmem, size = 0x1000, scoped, tag = 'input window, operand 0, single buffered']
    #allocation3 [shape = 's32[1]{0}', space=sflag, size = 0x4, scoped, tag = 'scoped memory for tpu_custom_call.1']
    #allocation4 [shape = 's32[1]{0}', space=sflag, size = 0x4, scoped, tag = 'scoped memory for tpu_custom_call.1']
    #allocation5 [shape = 'u8[16384]{0}', space=vmem, size = 0x4000, scoped, tag = 'input window, operand 7, single buffered']
    #allocation6 [shape = 's32[1]{0}', space=sflag, size = 0x4, scoped, tag = 'scoped memory for tpu_custom_call.1']
    #allocation7 [shape = 'u8[4096]{0}', space=vmem, size = 0x1000, scoped, tag = 'output window, operand 0, single buffered']
    %14 = vsyncpa [#allocation3], 0
    %15 = vsyncpa [#allocation6], 0
    %16 = vsyncpa [#allocation4], 0
    // Predicated region
    $region2: #{tpu_custom_call.1} parent=1 // pred_check
      _
    $region3: #{tpu_custom_call.1} parent=1 // pred_check_branch
      %18 = sbr.rel (0) target = $region5
    $region4: #{tpu_custom_call.1} parent=1 // pred_region
      %20 = vsyncadd [#allocation3], 0
      %s22 = sshll.u32 %s0, 4
      %s23 = int_to_ptr.hbm [resolvable:$true] %s22
      %s24 = sshll.u32 [#allocation2], 4
      %s25 = int_to_ptr.vmem [resolvable:$true] %s24
      %27 = dma.hbm_to_vmem [thread:$0]  %s23, 128, %s25, [#allocation3]
    $region5: #{tpu_custom_call.1} parent=1 // pred_fallthru
      _
    // Predicated region
    $region6: #{tpu_custom_call.1} parent=1 // pred_check
      _
    $region7: #{tpu_custom_call.1} parent=1 // pred_check_branch
      %29 = sbr.rel (0) target = $region9
    $region8: #{tpu_custom_call.1} parent=1 // pred_region
      _
    $region9: #{tpu_custom_call.1} parent=1 // pred_fallthru
      _
    // Predicated region
    $region10: #{tpu_custom_call.1} parent=1 // pred_check
      _
    $region11: #{tpu_custom_call.1} parent=1 // pred_check_branch
      %31 = sbr.rel (0) target = $region13
    $region12: #{tpu_custom_call.1} parent=1 // pred_region
      _
    $region13: #{tpu_custom_call.1} parent=1 // pred_fallthru
      _
    // Predicated region
    $region14: #{tpu_custom_call.1} parent=1 // pred_check
      _
    $region15: #{tpu_custom_call.1} parent=1 // pred_check_branch
      %33 = sbr.rel (0) target = $region17
    $region16: #{tpu_custom_call.1} parent=1 // pred_region
      _
    $region17: #{tpu_custom_call.1} parent=1 // pred_fallthru
      _
    // Predicated region
    $region18: #{tpu_custom_call.1} parent=1 // pred_check
      _
    $region19: #{tpu_custom_call.1} parent=1 // pred_check_branch
      %35 = sbr.rel (0) target = $region21
    $region20: #{tpu_custom_call.1} parent=1 // pred_region
      _
    $region21: #{tpu_custom_call.1} parent=1 // pred_fallthru
      _
    // Predicated region
    $region22: #{tpu_custom_call.1} parent=1 // pred_check
      _
    $region23: #{tpu_custom_call.1} parent=1 // pred_check_branch
      %37 = sbr.rel (0) target = $region25
    $region24: #{tpu_custom_call.1} parent=1 // pred_region
      _
    $region25: #{tpu_custom_call.1} parent=1 // pred_fallthru
      _
    // Predicated region
    $region26: #{tpu_custom_call.1} parent=1 // pred_check
      _
    $region27: #{tpu_custom_call.1} parent=1 // pred_check_branch
      %39 = sbr.rel (0) target = $region29
    $region28: #{tpu_custom_call.1} parent=1 // pred_region
      _
    $region29: #{tpu_custom_call.1} parent=1 // pred_fallthru
      _
    // Predicated region
    $region30: #{tpu_custom_call.1} parent=1 // pred_check
      _
    $region31: #{tpu_custom_call.1} parent=1 // pred_check_branch
      %41 = sbr.rel (0) target = $region33
    $region32: #{tpu_custom_call.1} parent=1 // pred_region
      %43 = vsyncadd [#allocation6], 0
      %s44 = sshll.u32 %s7, 4
      %s45 = int_to_ptr.hbm [resolvable:$true] %s44
      %s46 = sshll.u32 [#allocation5], 4
      %s47 = int_to_ptr.vmem [resolvable:$true] %s46
      %52 = dma.hbm_to_vmem [thread:$0]  %s45, 512, %s47, [#allocation6], 128, 128, 8
    $region33: #{tpu_custom_call.1} parent=1 // pred_fallthru
      _
    // Predicated region
    $region34: #{tpu_custom_call.1} parent=1 // pred_check
      _
    $region35: #{tpu_custom_call.1} parent=1 // pred_check_branch
      %54 = sbr.rel (0) target = $region37
    $region36: #{tpu_custom_call.1} parent=1 // pred_region
      _
    $region37: #{tpu_custom_call.1} parent=1 // pred_fallthru
      _
    // Predicated region
    $region38: #{tpu_custom_call.1} parent=1 // pred_check
      _
    $region39: #{tpu_custom_call.1} parent=1 // pred_check_branch
      %56 = sbr.rel (0) target = $region41
    $region40: #{tpu_custom_call.1} parent=1 // pred_region
      %58 = dma.done [#allocation3], 128
    $region41: #{tpu_custom_call.1} parent=1 // pred_fallthru
      _
    // Predicated region
    $region42: #{tpu_custom_call.1} parent=1 // pred_check
      _
    $region43: #{tpu_custom_call.1} parent=1 // pred_check_branch
      %60 = sbr.rel (0) target = $region45
    $region44: #{tpu_custom_call.1} parent=1 // pred_region
      %62 = dma.done [#allocation6], 512
    $region45: #{tpu_custom_call.1} parent=1 // pred_fallthru
      _
    %v63 = vld [vmem:[#allocation2] sm:$0xff]
    %v64 = vld [vmem:[%s1] sm:$0xff]
    %v65 = vld [vmem:[%s1 + $0x8] sm:$0xff]
    %v66 = vld [vmem:[%s1 + $0x10] sm:$0xff]
    %v67 = vld [vmem:[%s1 + $0x18] sm:$0xff]
    %v68 = vld [vmem:[%s2] sm:$0x1]
    %v70 = vperm.slane %v68, 0
    %vm72 = vcmask 261120
    %v74 = vsel %vm72, %v63, 0
    %76 = vmatpush.msra.mxu0 0.0
    %77 = vmatpush.msra.mxu0 0.0
    %78 = vmatpush.msra.mxu0 0.0
    %79 = vmatpush.msra.mxu0 0.0
    %80 = vmatpush.msra.mxu0 0.0
    %81 = vmatpush.msra.mxu0 0.0
    %82 = vmatpush.msra.mxu0 0.0
    %83 = vmatpush.msra.mxu0 0.0
    %84 = vmatpush.msra.mxu0 0.0
    %85 = vmatpush.msra.mxu0 0.0
    %86 = vmatpush.msra.mxu0 0.0
    %87 = vmatpush.msra.mxu0 0.0
    %88 = vmatpush.msra.mxu0 %v67
    %89 = vmatpush.msra.mxu0 %v66
    %90 = vmatpush.msra.mxu0 %v65
    %91 = vmatpush.msra.mxu0 %v64
    %92 = vmatmul.f32.gmra.mxu0 %v74
    %v93 = vpop.f32.mrf.mxu0
    %v94 = vadd.f32 %v70, %v93
    %95 = vdwg.mxu0
    %v96 = vtanh.pop %v94
    %v97 = vld [vmem:[%s3] sm:$0xff]
    %v98 = vld [vmem:[%s3 + $0x8] sm:$0xff]
    %v99 = vld [vmem:[%s3 + $0x10] sm:$0xff]
    %v100 = vld [vmem:[%s3 + $0x18] sm:$0xff]
    %v101 = vld [vmem:[%s3 + $0x20] sm:$0xff]
    %v102 = vld [vmem:[%s3 + $0x28] sm:$0xff]
    %v103 = vld [vmem:[%s3 + $0x30] sm:$0xff]
    %v104 = vld [vmem:[%s3 + $0x38] sm:$0xff]
    %v105 = vld [vmem:[%s4] sm:$0x1]
    %v107 = vperm.slane %v105, 0
    %vm109 = vcmask 523264
    %v111 = vsel %vm109, %v96, 0
    %113 = vmatpush.msra.mxu0 0.0
    %114 = vmatpush.msra.mxu0 0.0
    %115 = vmatpush.msra.mxu0 0.0
    %116 = vmatpush.msra.mxu0 0.0
    %117 = vmatpush.msra.mxu0 0.0
    %118 = vmatpush.msra.mxu0 0.0
    %119 = vmatpush.msra.mxu0 0.0
    %120 = vmatpush.msra.mxu0 0.0
    %121 = vmatpush.msra.mxu0 %v104
    %122 = vmatpush.msra.mxu0 %v103
    %123 = vmatpush.msra.mxu0 %v102
    %124 = vmatpush.msra.mxu0 %v101
    %125 = vmatpush.msra.mxu0 %v100
    %126 = vmatpush.msra.mxu0 %v99
    %127 = vmatpush.msra.mxu0 %v98
    %128 = vmatpush.msra.mxu0 %v97
    %129 = vmatmul.f32.gmra.mxu0 %v111
    %v130 = vpop.f32.mrf.mxu0
    %v131 = vadd.f32 %v107, %v130
    %132 = vdwg.mxu0
    %v133 = vmax.f32 %v131, 0.0
    %v134 = vld [vmem:[%s5] sm:$0xff]
    %v135 = vld [vmem:[%s5 + $0x8] sm:$0xff]
    %v136 = vld [vmem:[%s5 + $0x10] sm:$0xff]
    %v137 = vld [vmem:[%s5 + $0x18] sm:$0xff]
    %v138 = vld [vmem:[%s5 + $0x20] sm:$0xff]
    %v139 = vld [vmem:[%s5 + $0x28] sm:$0xff]
    %v140 = vld [vmem:[%s5 + $0x30] sm:$0xff]
    %v141 = vld [vmem:[%s5 + $0x38] sm:$0xff]
    %v142 = vld [vmem:[%s6] sm:$0x1]
    %v144 = vperm.slane %v142, 0
    %v147 = vsel %vm109, %v133, 0
    %149 = vmatpush.msra.mxu0 0.0
    %150 = vmatpush.msra.mxu0 0.0
    %151 = vmatpush.msra.mxu0 0.0
    %152 = vmatpush.msra.mxu0 0.0
    %153 = vmatpush.msra.mxu0 0.0
    %154 = vmatpush.msra.mxu0 0.0
    %155 = vmatpush.msra.mxu0 0.0
    %156 = vmatpush.msra.mxu0 0.0
    %157 = vmatpush.msra.mxu0 %v141
    %158 = vmatpush.msra.mxu0 %v140
    %159 = vmatpush.msra.mxu0 %v139
    %160 = vmatpush.msra.mxu0 %v138
    %161 = vmatpush.msra.mxu0 %v137
    %162 = vmatpush.msra.mxu0 %v136
    %163 = vmatpush.msra.mxu0 %v135
    %164 = vmatpush.msra.mxu0 %v134
    %165 = vmatmul.f32.gmra.mxu0 %v147
    %v166 = vpop.f32.mrf.mxu0
    %v167 = vadd.f32 %v144, %v166
    %168 = vdwg.mxu0
    %v169 = vmax.f32 %v167, 0.0
    %v170 = vld [vmem:[#allocation5] sm:$0xff]
    %v171 = vld [vmem:[#allocation5 + $0x8] sm:$0xff]
    %v172 = vld [vmem:[#allocation5 + $0x10] sm:$0xff]
    %v173 = vld [vmem:[#allocation5 + $0x18] sm:$0xff]
    %v174 = vld [vmem:[%s8] sm:$0x1]
    %v176 = vperm.slane %v174, 0
    %v179 = vsel %vm72, %v169, 0
    %181 = vmatpush.msra.mxu0 0.0
    %182 = vmatpush.msra.mxu0 0.0
    %183 = vmatpush.msra.mxu0 0.0
    %184 = vmatpush.msra.mxu0 0.0
    %185 = vmatpush.msra.mxu0 0.0
    %186 = vmatpush.msra.mxu0 0.0
    %187 = vmatpush.msra.mxu0 0.0
    %188 = vmatpush.msra.mxu0 0.0
    %189 = vmatpush.msra.mxu0 0.0
    %190 = vmatpush.msra.mxu0 0.0
    %191 = vmatpush.msra.mxu0 0.0
    %192 = vmatpush.msra.mxu0 0.0
    %193 = vmatpush.msra.mxu0 %v173
    %194 = vmatpush.msra.mxu0 %v172
    %195 = vmatpush.msra.mxu0 %v171
    %196 = vmatpush.msra.mxu0 %v170
    %197 = vmatmul.f32.gmra.mxu0 %v179
    %v198 = vpop.f32.mrf.mxu0
    %v199 = vadd.f32 %v176, %v198
    %200 = vdwg.mxu0
    %201 = vst [vmem:[#allocation7] sm:$0xff] %v199
    // Predicated region
    $region46: #{tpu_custom_call.1} parent=1 // pred_check
      _
    $region47: #{tpu_custom_call.1} parent=1 // pred_check_branch
      %203 = sbr.rel (0) target = $region49
    $region48: #{tpu_custom_call.1} parent=1 // pred_region
      %205 = vsyncadd [#allocation4], 0
      %s207 = sshll.u32 [#allocation7], 4
      %s208 = int_to_ptr.vmem [resolvable:$true] %s207
      %s209 = sshll.u32 %s9, 4
      %s210 = int_to_ptr.hbm [resolvable:$true] %s209
      %212 = dma.vmem_to_hbm [thread:$0]  %s208, 128, %s210, [#allocation4]
    $region49: #{tpu_custom_call.1} parent=1 // pred_fallthru
      _
    // Predicated region
    $region50: #{tpu_custom_call.1} parent=1 // pred_check
      _
    $region51: #{tpu_custom_call.1} parent=1 // pred_check_branch
      %214 = sbr.rel (0) target = $region53
    $region52: #{tpu_custom_call.1} parent=1 // pred_region
      %216 = dma.done [#allocation4], 128
    $region53: #{tpu_custom_call.1} parent=1 // pred_fallthru
      _
    %217 = vsyncpa [#allocation3], 1
    %218 = vsyncpa [#allocation6], 1
    %219 = vsyncpa [#allocation4], 1

</llo_original>
